<compile_context>
chip_gen: v7x
topology: tpu7x:2x2x1
jax: 0.10.0
libtpu: 0.0.40
codegen_flags: <defaults>
</compile_context>

<pallas_src>
import functools

import jax
import jax.numpy as jnp
from jax.experimental import pallas as pl
from jax.experimental.pallas import tpu as pltpu


def _soft_xent_kernel(x_ref, t_ref, out_ref, *, n_rows, tile_n,
                      steps_per_chunk, needs_mask):
    c = pl.program_id(0)          # row chunk  ("parallel" -> megacore shardable)
    s = pl.program_id(1)          # step in chunk ("arbitrary" -> reduction axis)

    # Output block is resident across the inner reduction axis: init per chunk.
    @pl.when(s == 0)
    def _():
        out_ref[...] = jnp.zeros_like(out_ref)

    x = x_ref[...].astype(jnp.float32)      # (tile_n, C)
    t = t_ref[...].astype(jnp.float32)      # (tile_n, C)

    if needs_mask:
        # Zero contributions from rows past the true batch size (partial tile).
        row0 = (c * steps_per_chunk + s) * tile_n
        rid = row0 + jax.lax.broadcasted_iota(jnp.int32, (tile_n, 1), 0)
        valid = rid < n_rows
        x = jnp.where(valid, x, 0.0)
        t = jnp.where(valid, t, 0.0)

    # Numerically stable log_softmax pieces along the class (lane) axis.
    m = jnp.max(x, axis=-1, keepdims=True)                          # (tile_n, 1)
    lse = jnp.log(jnp.sum(jnp.exp(x - m), axis=-1, keepdims=True))  # (tile_n, 1)

    # -t * log_softmax(x) == t * ((m + lse) - x); exact, no logp temporary.
    contrib = t * ((m + lse) - x)                                   # (tile_n, C)

    # Per-class partial sums: sublane-only reduce into the lane-dense resident
    # output row. Cross-lane reduce is deferred to the JAX wrapper.
    out_ref[...] += jnp.sum(contrib, axis=0, keepdims=True)         # (1, C)


def _round_up(a, b):
    return ((a + b - 1) // b) * b


def soft_target_cross_entropy(x, target, *, tile_n=None, max_chunks=8):
    """x, target: (N, C) (f32 or bf16). Returns scalar mean loss (float32)."""
    N, C = x.shape
    assert target.shape == (N, C)

    itemsize = jnp.dtype(x.dtype).itemsize
    sub = 16 if itemsize < 4 else 8          # sublane packing granularity

    if tile_n is None:
        # Per-input, per-buffer budget of 2 MiB => 2 inputs x 2 buffers <= 8 MiB,
        # comfortably under every generation's default scoped VMEM.
        budget = 2 * 1024 * 1024
        cap = max(sub, (budget // (C * itemsize)) // sub * sub)
        cap = min(cap, 1024)                 # diminishing returns past ~512-1024
        tile_n = min(cap, _round_up(N, sub))
    tile_n = max(sub, _round_up(tile_n, sub))

    # TODO(synk): for vocab-scale C (full row no longer fits the VMEM budget),
    # add a C grid axis with online (flash-style) max/logsumexp accumulation.

    num_tiles = pl.cdiv(N, tile_n)
    n_chunks = 1
    for cand in (max_chunks, 4, 2, 1):
        if cand >= 1 and num_tiles % cand == 0:
            n_chunks = cand
            break
    steps = num_tiles // n_chunks
    needs_mask = (N % tile_n) != 0

    kernel = functools.partial(
        _soft_xent_kernel,
        n_rows=N, tile_n=tile_n, steps_per_chunk=steps, needs_mask=needs_mask)

    partials = pl.pallas_call(
        kernel,
        out_shape=jax.ShapeDtypeStruct((n_chunks, C), jnp.float32),
        grid_spec=pltpu.PrefetchScalarGridSpec(
            num_scalar_prefetch=0,
            grid=(n_chunks, steps),
            in_specs=[
                pl.BlockSpec((tile_n, C), lambda c, s: (c * steps + s, 0)),
                pl.BlockSpec((tile_n, C), lambda c, s: (c * steps + s, 0)),
            ],
            out_specs=pl.BlockSpec((1, C), lambda c, s: (c, 0)),
        ),
        compiler_params=pltpu.CompilerParams(
            dimension_semantics=("parallel", "arbitrary"),
        ),
    )(x, target)

    # Final cross-lane / cross-chunk reduce and mean (tiny, done in XLA).
    return jnp.sum(partials) / jnp.float32(N)


if __name__ == "__main__":
    key = jax.random.PRNGKey(0)
    kx, kt = jax.random.split(key)

    def ref_loss(xf, tf):
        xf = xf.astype(jnp.float32)
        tf = tf.astype(jnp.float32)
        return jnp.mean(jnp.sum(-tf * jax.nn.log_softmax(xf, axis=-1), axis=-1))

    # Case 1: float32, divisible batch.
    N, C = 16, 128
    x = jax.random.normal(kx, (N, C), dtype=jnp.float32)
    target = jax.nn.softmax(jax.random.normal(kt, (N, C), dtype=jnp.float32), axis=-1)
    loss = jax.block_until_ready(soft_target_cross_entropy(x, target))
    ref = ref_loss(x, target)
    assert jnp.allclose(loss, ref, rtol=1e-5, atol=1e-5), (loss, ref)

    # Case 2: ragged batch (exercises padded-row masking) with bf16 inputs
    # (halved HBM traffic); compute is still f32 inside the kernel.
    N2 = 13
    x2 = jax.random.normal(kx, (N2, C), dtype=jnp.float32).astype(jnp.bfloat16)
    t2 = jax.nn.softmax(
        jax.random.normal(kt, (N2, C), dtype=jnp.float32), axis=-1
    ).astype(jnp.bfloat16)
    loss2 = jax.block_until_ready(soft_target_cross_entropy(x2, t2))
    ref2 = ref_loss(x2, t2)
    assert jnp.allclose(loss2, ref2, rtol=1e-4, atol=1e-4), (loss2, ref2)

    print("KERNEL_OK")
</pallas_src>

<mosaic_0001>
module attributes {stable_mosaic.version = 11 : i64} {
  func.func @_soft_xent_kernel(%arg0: i32, %arg1: i32, %arg2: memref<16x128xf32, #tpu.memory_space<vmem>>, %arg3: memref<16x128xf32, #tpu.memory_space<vmem>>, %arg4: memref<1x128xf32, #tpu.memory_space<vmem>>) attributes {dimension_semantics = [#tpu.dimension_semantics<parallel>, #tpu.dimension_semantics<arbitrary>], iteration_bounds = array<i64: 1, 1>, scalar_prefetch = 0 : i64, scratch_operands = 0 : i64, tpu.core_type = #tpu.core_type<tc>, window_params = [{transform_indices = @transform_0, window_bounds = array<i64: 16, 128>}, {transform_indices = @transform_1, window_bounds = array<i64: 16, 128>}, {transform_indices = @transform_2, window_bounds = array<i64: 1, 128>}]} {
    %c0_i32 = arith.constant 0 : i32
    %0 = arith.cmpi eq, %arg1, %c0_i32 : i32
    %1 = arith.extui %0 : i1 to i32
    %c0_i32_0 = arith.constant 0 : i32
    %2 = arith.cmpi ne, %1, %c0_i32_0 : i32
    scf.if %2 {
      %cst_10 = arith.constant 0.000000e+00 : f32
      %22 = vector.broadcast %cst_10 : f32 to vector<1x128xf32>
      %c0_11 = arith.constant 0 : index
      %c0_12 = arith.constant 0 : index
      %23 = vector.load %arg4[%c0_11, %c0_12] : memref<1x128xf32, #tpu.memory_space<vmem>>, vector<1x128xf32>
      tpu.vector_store %arg4[%c0_11, %c0_12], %22 {strides = array<i32>} : memref<1x128xf32, #tpu.memory_space<vmem>>, vector<1x128xf32>,
    } else {
    }
    %c0 = arith.constant 0 : index
    %c0_1 = arith.constant 0 : index
    %3 = vector.load %arg2[%c0, %c0_1] : memref<16x128xf32, #tpu.memory_space<vmem>>, vector<16x128xf32>
    %c0_2 = arith.constant 0 : index
    %c0_3 = arith.constant 0 : index
    %4 = vector.load %arg3[%c0_2, %c0_3] : memref<16x128xf32, #tpu.memory_space<vmem>>, vector<16x128xf32>
    %cst = arith.constant dense<0xFF800000> : vector<16xf32>
    %5 = vector.multi_reduction <maximumf>, %3, %cst [1] : vector<16x128xf32> to vector<16xf32>
    %6 = vector.shape_cast %5 : vector<16xf32> to vector<16x1xf32>
    %7 = vector.broadcast %6 : vector<16x1xf32> to vector<16x128xf32>
    %8 = arith.subf %3, %7 : vector<16x128xf32>
    %9 = math.exp %8 : vector<16x128xf32>
    %cst_4 = arith.constant dense<0.000000e+00> : vector<16xf32>
    %10 = vector.multi_reduction <add>, %9, %cst_4 [1] : vector<16x128xf32> to vector<16xf32>
    %11 = vector.shape_cast %10 : vector<16xf32> to vector<16x1xf32>
    %12 = math.log %11 : vector<16x1xf32>
    %13 = arith.addf %6, %12 : vector<16x1xf32>
    %14 = vector.broadcast %13 : vector<16x1xf32> to vector<16x128xf32>
    %15 = arith.subf %14, %3 : vector<16x128xf32>
    %16 = arith.mulf %4, %15 : vector<16x128xf32>
    %c0_5 = arith.constant 0 : index
    %c0_6 = arith.constant 0 : index
    %17 = vector.load %arg4[%c0_5, %c0_6] : memref<1x128xf32, #tpu.memory_space<vmem>>, vector<1x128xf32>
    %cst_7 = arith.constant dense<0.000000e+00> : vector<128xf32>
    %18 = vector.multi_reduction <add>, %16, %cst_7 [0] : vector<16x128xf32> to vector<128xf32>
    %19 = vector.shape_cast %18 : vector<128xf32> to vector<1x128xf32>
    %20 = arith.addf %17, %19 : vector<1x128xf32>
    %c0_8 = arith.constant 0 : index
    %c0_9 = arith.constant 0 : index
    %21 = vector.load %arg4[%c0_8, %c0_9] : memref<1x128xf32, #tpu.memory_space<vmem>>, vector<1x128xf32>
    tpu.vector_store %arg4[%c0_8, %c0_9], %20 {strides = array<i32>} : memref<1x128xf32, #tpu.memory_space<vmem>>, vector<1x128xf32>,
    return
  }
  func.func @transform_0(%arg0: i32, %arg1: i32) -> (i32, i32) {
    %c1_i32 = arith.constant 1 : i32
    %0 = arith.muli %arg0, %c1_i32 : i32
    %1 = arith.addi %0, %arg1 : i32
    %c0_i32 = arith.constant 0 : i32
    %c0_i32_0 = arith.constant 0 : i32
    return %1, %c0_i32 : i32, i32
  }
  func.func @transform_1(%arg0: i32, %arg1: i32) -> (i32, i32) {
    %c1_i32 = arith.constant 1 : i32
    %0 = arith.muli %arg0, %c1_i32 : i32
    %1 = arith.addi %0, %arg1 : i32
    %c0_i32 = arith.constant 0 : i32
    %c0_i32_0 = arith.constant 0 : i32
    return %1, %c0_i32 : i32, i32
  }
  func.func @transform_2(%arg0: i32, %arg1: i32) -> (i32, i32) {
    %c0_i32 = arith.constant 0 : i32
    %c0_i32_0 = arith.constant 0 : i32
    return %arg0, %c0_i32 : i32, i32
  }
}

</mosaic_0001>

<llo_original>
// kernel: tpu_custom_call.1
$region0: #{tpu_custom_call.1}
  #allocation0 [shape = 'u32[]', space=smem, size = 0x4, offset = 0x4, fixed_abs, tag = 'smem constant byte address 0x4 - core index']
  #allocation1 [shape = 'u32[144,128]{1,0:T(1,128)}', space=vmem, size = 0x12000, scoped, tag = 'internal scratch']
  %s0 = inlined_call_operand.hbm [shape: f32[16,128], index: 0, kind: input, shape index: {}]
  %s1 = inlined_call_operand.hbm [shape: f32[16,128], index: 1, kind: input, shape index: {}]
  %s2 = inlined_call_operand.hbm [shape: f32[1,128], index: 2, kind: output, shape index: {}]
  %s3 = sld [smem:[#allocation0]]
  $region30: #{tpu_custom_call.1} parent=0
    _
  %s5 = ssub.s32 1, %s3
  %s6 = scalar_select 0, %s5, %s3
  $region1: #{tpu_custom_call.1} parent=0
    #allocation2 [shape = 'u8[8192]{0}', space=vmem, size = 0x2000, scoped, tag = 'input window, operand 0, single buffered']
    #allocation3 [shape = 's32[1]{0}', space=sflag, size = 0x4, scoped, tag = 'scoped memory for tpu_custom_call.1']
    #allocation4 [shape = 's32[1]{0}', space=sflag, size = 0x4, scoped, tag = 'scoped memory for tpu_custom_call.1']
    #allocation5 [shape = 'u8[8192]{0}', space=vmem, size = 0x2000, scoped, tag = 'input window, operand 1, single buffered']
    #allocation6 [shape = 's32[1]{0}', space=sflag, size = 0x4, scoped, tag = 'scoped memory for tpu_custom_call.1']
    #allocation7 [shape = 'u8[512]{0}', space=vmem, size = 0x400, scoped, tag = 'output window, operand 0, single buffered']
    %7 = vsyncpa [#allocation3], 0
    %8 = vsyncpa [#allocation6], 0
    %9 = vsyncpa [#allocation4], 0
    // Predicated region
    $region2: #{tpu_custom_call.1} parent=1 // pred_check
      _
    $region3: #{tpu_custom_call.1} parent=1 // pred_check_branch
      %11 = sbr.rel (0) target = $region5
    $region4: #{tpu_custom_call.1} parent=1 // pred_region
      %s12 = sadd.s32 0, 0
      %s13 = smul.u32 2, %s12
      %s15 = ssub.s32 256, 256
      %16 = vsyncadd [#allocation3], %s15
      %s17 = smul.addr %s13, 128
      %s18 = scalar_lea.hbm %s0, %s17
      %s19 = sshll.u32 [#allocation2], 4
      %s20 = int_to_ptr.vmem [resolvable:$true] %s19
      %25 = dma.hbm_to_vmem [thread:$0]  %s18, 256, %s20, [#allocation3], 128, 128, 8
    $region5: #{tpu_custom_call.1} parent=1 // pred_fallthru
      _
    // Predicated region
    $region6: #{tpu_custom_call.1} parent=1 // pred_check
      _
    $region7: #{tpu_custom_call.1} parent=1 // pred_check_branch
      %27 = sbr.rel (0) target = $region9
    $region8: #{tpu_custom_call.1} parent=1 // pred_region
      %s28 = sadd.s32 0, 0
      %s29 = smul.u32 2, %s28
      %s31 = ssub.s32 256, 256
      %32 = vsyncadd [#allocation6], %s31
      %s33 = smul.addr %s29, 128
      %s34 = scalar_lea.hbm %s1, %s33
      %s35 = sshll.u32 [#allocation5], 4
      %s36 = int_to_ptr.vmem [resolvable:$true] %s35
      %41 = dma.hbm_to_vmem [thread:$0]  %s34, 256, %s36, [#allocation6], 128, 128, 8
    $region9: #{tpu_custom_call.1} parent=1 // pred_fallthru
      _
    // Predicated region
    $region10: #{tpu_custom_call.1} parent=1 // pred_check
      _
    $region11: #{tpu_custom_call.1} parent=1 // pred_check_branch
      %43 = sbr.rel (0) target = $region13
    $region12: #{tpu_custom_call.1} parent=1 // pred_region
      %44 = dma.done [#allocation3], 256
    $region13: #{tpu_custom_call.1} parent=1 // pred_fallthru
      _
    // Predicated region
    $region14: #{tpu_custom_call.1} parent=1 // pred_check
      _
    $region15: #{tpu_custom_call.1} parent=1 // pred_check_branch
      %46 = sbr.rel (0) target = $region17
    $region16: #{tpu_custom_call.1} parent=1 // pred_region
      %47 = dma.done [#allocation6], 256
    $region17: #{tpu_custom_call.1} parent=1 // pred_fallthru
      _
    %s48 = sadd.s32 0, 0
    %s49 = smul.u32 2, %s48
    %s50 = sadd.s32 0, 0
    %s51 = smul.u32 2, %s50
    %p52 = scmp.eq.s32.totalorder 0, 0
    // Predicated region
    $region18: #{tpu_custom_call.1} parent=1 // pred_check
      %p53 = pneg %p52
    $region19: #{tpu_custom_call.1} parent=1 // pred_check_branch
      %55 = sbr.rel (%p53) target = $region21
    $region20: #{tpu_custom_call.1} parent=1 // pred_region
      %56 = vst [vmem:[#allocation7] sm:$0x1] 0.0
    $region21: #{tpu_custom_call.1} parent=1 // pred_fallthru
      _
    %v57 = vld [vmem:[#allocation2] sm:$0xff]
    %v58 = vld [vmem:[#allocation2 + $0x8] sm:$0xff]
    %v59 = vld [vmem:[#allocation5] sm:$0xff]
    %v60 = vld [vmem:[#allocation5 + $0x8] sm:$0xff]
    %61 = vmax.xlane.f32.xlu0 %v57
    %v62 = vpop.xlane.xlu0 %61
    %63 = vmax.xlane.f32.xlu0 %v58
    %v64 = vpop.xlane.xlu0 %63
    %v65 = vsub.f32 %v57, %v62
    %v66 = vsub.f32 %v58, %v64
    %v67 = vmul.f32 %v65, 1.442695
    %v68 = vpow.pop %v67
    %v69 = vmul.f32 %v66, 1.442695
    %v70 = vpow.pop %v69
    %71 = vadd.xlane.f32.xlu0 %v68
    %v72 = vpop.xlane.xlu0 %71
    %73 = vadd.xlane.f32.xlu0 %v70
    %v74 = vpop.xlane.xlu0 %73
    %v75 = vlog2.pop %v72
    %v76 = vmul.f32 %v75, 0.6931472
    %v77 = vlog2.pop %v74
    %v78 = vmul.f32 %v77, 0.6931472
    %v79 = vadd.f32 %v62, %v76
    %v80 = vadd.f32 %v64, %v78
    %v81 = vsub.f32 %v79, %v57
    %v82 = vsub.f32 %v80, %v58
    %v83 = vmul.f32 %v59, %v81
    %v84 = vmul.f32 %v60, %v82
    %v85 = vld [vmem:[#allocation7] sm:$0x1]
    %v86 = vadd.f32 %v83, %v84
    %v87 = vrot.slane %v86, 4
    %v88 = vadd.f32 %v86, %v87
    %v89 = vrot.slane %v88, 2
    %v90 = vadd.f32 %v88, %v89
    %v91 = vrot.slane %v90, 1
    %v92 = vadd.f32 %v90, %v91
    %v93 = vadd.f32 %v85, %v92
    %94 = vst [vmem:[#allocation7] sm:$0x1] %v93
    // Predicated region
    $region22: #{tpu_custom_call.1} parent=1 // pred_check
      _
    $region23: #{tpu_custom_call.1} parent=1 // pred_check_branch
      %96 = sbr.rel (0) target = $region25
    $region24: #{tpu_custom_call.1} parent=1 // pred_region
      %s98 = ssub.s32 16, 16
      %99 = vsyncadd [#allocation4], %s98
      %s101 = sshll.u32 [#allocation7], 4
      %s102 = int_to_ptr.vmem [resolvable:$true] %s101
      %104 = dma.vmem_to_hbm [thread:$0]  %s102, 16, %s2, [#allocation4]
    $region25: #{tpu_custom_call.1} parent=1 // pred_fallthru
      _
    // Predicated region
    $region26: #{tpu_custom_call.1} parent=1 // pred_check
      _
    $region27: #{tpu_custom_call.1} parent=1 // pred_check_branch
      %106 = sbr.rel (0) target = $region29
    $region28: #{tpu_custom_call.1} parent=1 // pred_region
      %107 = dma.done [#allocation4], 16
    $region29: #{tpu_custom_call.1} parent=1 // pred_fallthru
      _
    %108 = vsyncpa [#allocation3], 1
    %109 = vsyncpa [#allocation6], 1
    %110 = vsyncpa [#allocation4], 1

</llo_original>
